<compile_context>
chip_gen: v7x
topology: tpu7x:2x2x1
jax: 0.10.0
libtpu: 0.0.40
codegen_flags: <defaults>
</compile_context>

<pallas_src>
import functools

import jax
import jax.numpy as jnp
from jax.experimental import pallas as pl
from jax.experimental.pallas import tpu as pltpu


# ----------------------------- configuration --------------------------------
LATENT_DIM = 32
STATE_DIM = 16
STATE_EMBED_DIM = 32
ACTION_DIM = 4
ACTION_EMBED_DIM = 16
LAYERS = (64, 64)
OUT_DIM = 1                      # pred_type='deterministic'
OUT_PAD = 128                    # lane-dense padded output width
BATCH = 16


# ------------------------------- the kernel ---------------------------------
def reward_decoder_kernel(
    lat_ref, states_ref, act_ref,              # activations (whole batch)
    wse_ref, bse_ref,                          # state encoder (shared next/prev)
    wae_ref, bae_ref,                          # action encoder
    w1_ref, b1_ref, w2_ref, b2_ref,            # fc layers
    wo_ref, bo_ref,                            # fc_out (padded to OUT_PAD lanes)
    out_ref,
    *, batch,
):
    relu = lambda x: jnp.maximum(x, 0.0)
    f32 = jnp.float32

    # Shared FeatureExtractor(state_dim, state_embed_dim, relu) applied once to
    # [next_state; prev_state] stacked along the batch axis -> one matmul.
    hs = relu(jnp.dot(states_ref[...], wse_ref[...], preferred_element_type=f32)
              + bse_ref[...])
    hns = hs[:batch, :]            # sublane-aligned static split (batch % 8 == 0)
    hps = hs[batch:, :]

    ha = relu(jnp.dot(act_ref[...], wae_ref[...], preferred_element_type=f32)
              + bae_ref[...])

    # fc_layers[0] WITHOUT a lane-axis concat: accumulate partial matmuls over
    # static row slices of w1.  Concat order in the reference is
    # [latent, hns, ha, hps]; row offsets 0/32/64/80 are all multiples of 8.
    o0 = LATENT_DIM
    o1 = o0 + STATE_EMBED_DIM
    o2 = o1 + ACTION_EMBED_DIM
    h = (jnp.dot(lat_ref[...], w1_ref[:o0, :], preferred_element_type=f32)
         + jnp.dot(hns, w1_ref[o0:o1, :], preferred_element_type=f32)
         + jnp.dot(ha, w1_ref[o1:o2, :], preferred_element_type=f32)
         + jnp.dot(hps, w1_ref[o2:, :], preferred_element_type=f32)
         + b1_ref[...])
    h = relu(h)

    # fc_layers[1]
    h = relu(jnp.dot(h, w2_ref[...], preferred_element_type=f32) + b2_ref[...])

    # fc_out: zero-padded to OUT_PAD lanes so the store is unmasked/lane-dense.
    out_ref[...] = (jnp.dot(h, wo_ref[...], preferred_element_type=f32)
                    + bo_ref[...]).astype(out_ref.dtype)


# ------------------------------- the wrapper ---------------------------------
def reward_decoder_forward(latent_state, next_state, prev_state, actions, params):
    # TODO(synk): utl.squash_action depends on args.norm_actions_post_sampling;
    # treated as identity here (flag off).
    B = latent_state.shape[0]
    (wse, bse, wae, bae, w1, b1, w2, b2, wo, bo) = params

    # Stack the two state-encoder inputs along batch (one matmul in-kernel,
    # one fewer input DMA).
    states = jnp.concatenate([next_state, prev_state], axis=0)

    # Zero-pad the output head to 128 lanes (lane-dense store in the kernel).
    wo_p = jnp.zeros((wo.shape[0], OUT_PAD), wo.dtype).at[:, :OUT_DIM].set(wo)
    bo_p = jnp.zeros((1, OUT_PAD), bo.dtype).at[:, :OUT_DIM].set(bo)

    vmem = pl.BlockSpec(memory_space=pltpu.MemorySpace.VMEM)
    n_in = 13

    out = pl.pallas_call(
        functools.partial(reward_decoder_kernel, batch=B),
        out_shape=jax.ShapeDtypeStruct((B, OUT_PAD), jnp.float32),
        in_specs=[vmem] * n_in,
        out_specs=vmem,
    )(latent_state, states, actions,
      wse, bse, wae, bae, w1, b1, w2, b2, wo_p, bo_p)

    return out[:, :OUT_DIM]


# ------------------------ deterministic parameter init -----------------------
def init_params(key):
    def linear(key, fan_in, fan_out):
        k1, k2 = jax.random.split(key)
        bound = 1.0 / jnp.sqrt(fan_in)
        # stored as [in, out] (transpose of torch's [out, in])
        w = jax.random.uniform(k1, (fan_in, fan_out), jnp.float32, -bound, bound)
        b = jax.random.uniform(k2, (1, fan_out), jnp.float32, -bound, bound)
        return w, b

    keys = jax.random.split(key, 5)
    wse, bse = linear(keys[0], STATE_DIM, STATE_EMBED_DIM)      # state_encoder
    wae, bae = linear(keys[1], ACTION_DIM, ACTION_EMBED_DIM)    # action_encoder
    curr = LATENT_DIM + STATE_EMBED_DIM + ACTION_EMBED_DIM + STATE_EMBED_DIM
    w1, b1 = linear(keys[2], curr, LAYERS[0])                   # fc_layers[0]
    w2, b2 = linear(keys[3], LAYERS[0], LAYERS[1])              # fc_layers[1]
    wo, bo = linear(keys[4], LAYERS[1], OUT_DIM)                # fc_out
    return (wse, bse, wae, bae, w1, b1, w2, b2, wo, bo)


# --------------------------- pure-JAX reference -------------------------------
def reward_decoder_ref(latent_state, next_state, prev_state, actions, params):
    (wse, bse, wae, bae, w1, b1, w2, b2, wo, bo) = params
    relu = lambda x: jnp.maximum(x, 0.0)
    hns = relu(next_state @ wse + bse)
    ha = relu(actions @ wae + bae)
    hps = relu(prev_state @ wse + bse)
    h = jnp.concatenate([latent_state, hns, ha, hps], axis=-1)
    h = relu(h @ w1 + b1)
    h = relu(h @ w2 + b2)
    return h @ wo + bo


if __name__ == "__main__":
    key = jax.random.PRNGKey(0)
    kp, kl, kn, kpv, ka = jax.random.split(key, 5)

    params = init_params(kp)
    latent_state = jax.random.normal(kl, (BATCH, LATENT_DIM), jnp.float32)
    next_state = jax.random.normal(kn, (BATCH, STATE_DIM), jnp.float32)
    prev_state = jax.random.normal(kpv, (BATCH, STATE_DIM), jnp.float32)
    actions = jax.random.normal(ka, (BATCH, ACTION_DIM), jnp.float32)

    out = reward_decoder_forward(latent_state, next_state, prev_state, actions, params)
    out = jax.block_until_ready(out)

    ref = reward_decoder_ref(latent_state, next_state, prev_state, actions, params)
    assert out.shape == (BATCH, OUT_DIM)
    assert jnp.allclose(out, ref, atol=1e-4, rtol=1e-4), "mismatch vs reference"

    print("KERNEL_OK")
</pallas_src>

<mosaic_0001>
module attributes {stable_mosaic.version = 11 : i64} {
  func.func @reward_decoder_kernel(%arg0: memref<16x32xf32, #tpu.memory_space<vmem>>, %arg1: memref<32x16xf32, #tpu.memory_space<vmem>>, %arg2: memref<16x4xf32, #tpu.memory_space<vmem>>, %arg3: memref<16x32xf32, #tpu.memory_space<vmem>>, %arg4: memref<1x32xf32, #tpu.memory_space<vmem>>, %arg5: memref<4x16xf32, #tpu.memory_space<vmem>>, %arg6: memref<1x16xf32, #tpu.memory_space<vmem>>, %arg7: memref<112x64xf32, #tpu.memory_space<vmem>>, %arg8: memref<1x64xf32, #tpu.memory_space<vmem>>, %arg9: memref<64x64xf32, #tpu.memory_space<vmem>>, %arg10: memref<1x64xf32, #tpu.memory_space<vmem>>, %arg11: memref<64x128xf32, #tpu.memory_space<vmem>>, %arg12: memref<1x128xf32, #tpu.memory_space<vmem>>, %arg13: memref<16x128xf32, #tpu.memory_space<vmem>>) attributes {dimension_semantics = [], scalar_prefetch = 0 : i64, scratch_operands = 0 : i64, tpu.core_type = #tpu.core_type<tc>} {
    %c0 = arith.constant 0 : index
    %c0_0 = arith.constant 0 : index
    %0 = vector.load %arg1[%c0, %c0_0] : memref<32x16xf32, #tpu.memory_space<vmem>>, vector<32x16xf32>
    %c0_1 = arith.constant 0 : index
    %c0_2 = arith.constant 0 : index
    %1 = vector.load %arg3[%c0_1, %c0_2] : memref<16x32xf32, #tpu.memory_space<vmem>>, vector<16x32xf32>
    %cst = arith.constant dense<0.000000e+00> : vector<32x32xf32>
    %2 = tpu.matmul %0, %1, %cst {dimension_numbers = #tpu.dot_dimension_numbers<[1], [0], [0], [1], [0, 0, 1, 1], [], []>} : vector<32x16xf32>, vector<16x32xf32>, vector<32x32xf32> -> vector<32x32xf32>
    %c0_3 = arith.constant 0 : index
    %c0_4 = arith.constant 0 : index
    %3 = vector.load %arg4[%c0_3, %c0_4] : memref<1x32xf32, #tpu.memory_space<vmem>>, vector<1x32xf32>
    %4 = vector.broadcast %3 : vector<1x32xf32> to vector<32x32xf32>
    %5 = arith.addf %2, %4 : vector<32x32xf32>
    %cst_5 = arith.constant 0.000000e+00 : f32
    %6 = vector.broadcast %cst_5 : f32 to vector<32x32xf32>
    %7 = arith.maximumf %5, %6 : vector<32x32xf32>
    %8 = vector.extract_strided_slice %7 {offsets = [0, 0], sizes = [16, 32], strides = [1, 1]} : vector<32x32xf32> to vector<16x32xf32>
    %9 = vector.extract_strided_slice %7 {offsets = [16, 0], sizes = [16, 32], strides = [1, 1]} : vector<32x32xf32> to vector<16x32xf32>
    %c0_6 = arith.constant 0 : index
    %c0_7 = arith.constant 0 : index
    %10 = vector.load %arg2[%c0_6, %c0_7] : memref<16x4xf32, #tpu.memory_space<vmem>>, vector<16x4xf32>
    %c0_8 = arith.constant 0 : index
    %c0_9 = arith.constant 0 : index
    %11 = vector.load %arg5[%c0_8, %c0_9] : memref<4x16xf32, #tpu.memory_space<vmem>>, vector<4x16xf32>
    %cst_10 = arith.constant dense<0.000000e+00> : vector<16x16xf32>
    %12 = tpu.matmul %10, %11, %cst_10 {dimension_numbers = #tpu.dot_dimension_numbers<[1], [0], [0], [1], [0, 0, 1, 1], [], []>} : vector<16x4xf32>, vector<4x16xf32>, vector<16x16xf32> -> vector<16x16xf32>
    %c0_11 = arith.constant 0 : index
    %c0_12 = arith.constant 0 : index
    %13 = vector.load %arg6[%c0_11, %c0_12] : memref<1x16xf32, #tpu.memory_space<vmem>>, vector<1x16xf32>
    %14 = vector.broadcast %13 : vector<1x16xf32> to vector<16x16xf32>
    %15 = arith.addf %12, %14 : vector<16x16xf32>
    %cst_13 = arith.constant 0.000000e+00 : f32
    %16 = vector.broadcast %cst_13 : f32 to vector<16x16xf32>
    %17 = arith.maximumf %15, %16 : vector<16x16xf32>
    %c0_14 = arith.constant 0 : index
    %c0_15 = arith.constant 0 : index
    %18 = vector.load %arg0[%c0_14, %c0_15] : memref<16x32xf32, #tpu.memory_space<vmem>>, vector<16x32xf32>
    %c0_16 = arith.constant 0 : index
    %c0_17 = arith.constant 0 : index
    %19 = vector.load %arg7[%c0_16, %c0_17] : memref<112x64xf32, #tpu.memory_space<vmem>>, vector<32x64xf32>
    %cst_18 = arith.constant dense<0.000000e+00> : vector<16x64xf32>
    %20 = tpu.matmul %18, %19, %cst_18 {dimension_numbers = #tpu.dot_dimension_numbers<[1], [0], [0], [1], [0, 0, 1, 1], [], []>} : vector<16x32xf32>, vector<32x64xf32>, vector<16x64xf32> -> vector<16x64xf32>
    %c32 = arith.constant 32 : index
    %c0_19 = arith.constant 0 : index
    %21 = vector.load %arg7[%c32, %c0_19] : memref<112x64xf32, #tpu.memory_space<vmem>>, vector<32x64xf32>
    %cst_20 = arith.constant dense<0.000000e+00> : vector<16x64xf32>
    %22 = tpu.matmul %8, %21, %cst_20 {dimension_numbers = #tpu.dot_dimension_numbers<[1], [0], [0], [1], [0, 0, 1, 1], [], []>} : vector<16x32xf32>, vector<32x64xf32>, vector<16x64xf32> -> vector<16x64xf32>
    %23 = arith.addf %20, %22 : vector<16x64xf32>
    %c64 = arith.constant 64 : index
    %c0_21 = arith.constant 0 : index
    %24 = vector.load %arg7[%c64, %c0_21] : memref<112x64xf32, #tpu.memory_space<vmem>>, vector<16x64xf32>
    %cst_22 = arith.constant dense<0.000000e+00> : vector<16x64xf32>
    %25 = tpu.matmul %17, %24, %cst_22 {dimension_numbers = #tpu.dot_dimension_numbers<[1], [0], [0], [1], [0, 0, 1, 1], [], []>} : vector<16x16xf32>, vector<16x64xf32>, vector<16x64xf32> -> vector<16x64xf32>
    %26 = arith.addf %23, %25 : vector<16x64xf32>
    %c80 = arith.constant 80 : index
    %c0_23 = arith.constant 0 : index
    %27 = vector.load %arg7[%c80, %c0_23] : memref<112x64xf32, #tpu.memory_space<vmem>>, vector<32x64xf32>
    %cst_24 = arith.constant dense<0.000000e+00> : vector<16x64xf32>
    %28 = tpu.matmul %9, %27, %cst_24 {dimension_numbers = #tpu.dot_dimension_numbers<[1], [0], [0], [1], [0, 0, 1, 1], [], []>} : vector<16x32xf32>, vector<32x64xf32>, vector<16x64xf32> -> vector<16x64xf32>
    %29 = arith.addf %26, %28 : vector<16x64xf32>
    %c0_25 = arith.constant 0 : index
    %c0_26 = arith.constant 0 : index
    %30 = vector.load %arg8[%c0_25, %c0_26] : memref<1x64xf32, #tpu.memory_space<vmem>>, vector<1x64xf32>
    %31 = vector.broadcast %30 : vector<1x64xf32> to vector<16x64xf32>
    %32 = arith.addf %29, %31 : vector<16x64xf32>
    %cst_27 = arith.constant 0.000000e+00 : f32
    %33 = vector.broadcast %cst_27 : f32 to vector<16x64xf32>
    %34 = arith.maximumf %32, %33 : vector<16x64xf32>
    %c0_28 = arith.constant 0 : index
    %c0_29 = arith.constant 0 : index
    %35 = vector.load %arg9[%c0_28, %c0_29] : memref<64x64xf32, #tpu.memory_space<vmem>>, vector<64x64xf32>
    %cst_30 = arith.constant dense<0.000000e+00> : vector<16x64xf32>
    %36 = tpu.matmul %34, %35, %cst_30 {dimension_numbers = #tpu.dot_dimension_numbers<[1], [0], [0], [1], [0, 0, 1, 1], [], []>} : vector<16x64xf32>, vector<64x64xf32>, vector<16x64xf32> -> vector<16x64xf32>
    %c0_31 = arith.constant 0 : index
    %c0_32 = arith.constant 0 : index
    %37 = vector.load %arg10[%c0_31, %c0_32] : memref<1x64xf32, #tpu.memory_space<vmem>>, vector<1x64xf32>
    %38 = vector.broadcast %37 : vector<1x64xf32> to vector<16x64xf32>
    %39 = arith.addf %36, %38 : vector<16x64xf32>
    %cst_33 = arith.constant 0.000000e+00 : f32
    %40 = vector.broadcast %cst_33 : f32 to vector<16x64xf32>
    %41 = arith.maximumf %39, %40 : vector<16x64xf32>
    %c0_34 = arith.constant 0 : index
    %c0_35 = arith.constant 0 : index
    %42 = vector.load %arg11[%c0_34, %c0_35] : memref<64x128xf32, #tpu.memory_space<vmem>>, vector<64x128xf32>
    %cst_36 = arith.constant dense<0.000000e+00> : vector<16x128xf32>
    %43 = tpu.matmul %41, %42, %cst_36 {dimension_numbers = #tpu.dot_dimension_numbers<[1], [0], [0], [1], [0, 0, 1, 1], [], []>} : vector<16x64xf32>, vector<64x128xf32>, vector<16x128xf32> -> vector<16x128xf32>
    %c0_37 = arith.constant 0 : index
    %c0_38 = arith.constant 0 : index
    %44 = vector.load %arg12[%c0_37, %c0_38] : memref<1x128xf32, #tpu.memory_space<vmem>>, vector<1x128xf32>
    %45 = vector.broadcast %44 : vector<1x128xf32> to vector<16x128xf32>
    %46 = arith.addf %43, %45 : vector<16x128xf32>
    %c0_39 = arith.constant 0 : index
    %c0_40 = arith.constant 0 : index
    %47 = vector.load %arg13[%c0_39, %c0_40] : memref<16x128xf32, #tpu.memory_space<vmem>>, vector<16x128xf32>
    tpu.vector_store %arg13[%c0_39, %c0_40], %46 {strides = array<i32>} : memref<16x128xf32, #tpu.memory_space<vmem>>, vector<16x128xf32>,
    return
  }
}

</mosaic_0001>

<llo_original>
// kernel: tpu_custom_call.1
$region0: #{tpu_custom_call.1}
  #allocation0 [shape = 'u32[]', space=smem, size = 0x4, offset = 0x4, fixed_abs, tag = 'smem constant byte address 0x4 - core index']
  #allocation1 [shape = 'u32[144,128]{1,0:T(1,128)}', space=vmem, size = 0x12000, scoped, tag = 'internal scratch']
  %s0 = inlined_call_operand.vmem [shape: f32[16,32], index: 0, kind: input, shape index: {}]
  %s1 = inlined_call_operand.vmem [shape: f32[32,16], index: 1, kind: input, shape index: {}]
  %s2 = inlined_call_operand.vmem [shape: f32[16,4], index: 2, kind: input, shape index: {}]
  %s3 = inlined_call_operand.vmem [shape: f32[16,32], index: 3, kind: input, shape index: {}]
  %s4 = inlined_call_operand.vmem [shape: f32[1,32], index: 4, kind: input, shape index: {}]
  %s5 = inlined_call_operand.vmem [shape: f32[4,16], index: 5, kind: input, shape index: {}]
  %s6 = inlined_call_operand.vmem [shape: f32[1,16], index: 6, kind: input, shape index: {}]
  %s7 = inlined_call_operand.vmem [shape: f32[112,64], index: 7, kind: input, shape index: {}]
  %s8 = inlined_call_operand.vmem [shape: f32[1,64], index: 8, kind: input, shape index: {}]
  %s9 = inlined_call_operand.vmem [shape: f32[64,64], index: 9, kind: input, shape index: {}]
  %s10 = inlined_call_operand.vmem [shape: f32[1,64], index: 10, kind: input, shape index: {}]
  %s11 = inlined_call_operand.vmem [shape: f32[64,128], index: 11, kind: input, shape index: {}]
  %s12 = inlined_call_operand.vmem [shape: f32[1,128], index: 12, kind: input, shape index: {}]
  %s13 = inlined_call_operand.hbm [shape: f32[16,128], index: 13, kind: output, shape index: {}]
  %s14 = sld [smem:[#allocation0]]
  $region62: #{tpu_custom_call.1} parent=0
    _
  %s16 = ssub.s32 1, %s14
  %s17 = scalar_select 0, %s16, %s14
  $region1: #{tpu_custom_call.1} parent=0
    #allocation2 [shape = 'u8[8192]{0}', space=vmem, size = 0x2000, scoped, tag = 'output window, operand 0, single buffered']
    #allocation3 [shape = 's32[1]{0}', space=sflag, size = 0x4, scoped, tag = 'scoped memory for tpu_custom_call.1']
    %18 = vsyncpa [#allocation3], 0
    // Predicated region
    $region2: #{tpu_custom_call.1} parent=1 // pred_check
      _
    $region3: #{tpu_custom_call.1} parent=1 // pred_check_branch
      %20 = sbr.rel (0) target = $region5
    $region4: #{tpu_custom_call.1} parent=1 // pred_region
      _
    $region5: #{tpu_custom_call.1} parent=1 // pred_fallthru
      _
    // Predicated region
    $region6: #{tpu_custom_call.1} parent=1 // pred_check
      _
    $region7: #{tpu_custom_call.1} parent=1 // pred_check_branch
      %22 = sbr.rel (0) target = $region9
    $region8: #{tpu_custom_call.1} parent=1 // pred_region
      _
    $region9: #{tpu_custom_call.1} parent=1 // pred_fallthru
      _
    // Predicated region
    $region10: #{tpu_custom_call.1} parent=1 // pred_check
      _
    $region11: #{tpu_custom_call.1} parent=1 // pred_check_branch
      %24 = sbr.rel (0) target = $region13
    $region12: #{tpu_custom_call.1} parent=1 // pred_region
      _
    $region13: #{tpu_custom_call.1} parent=1 // pred_fallthru
      _
    // Predicated region
    $region14: #{tpu_custom_call.1} parent=1 // pred_check
      _
    $region15: #{tpu_custom_call.1} parent=1 // pred_check_branch
      %26 = sbr.rel (0) target = $region17
    $region16: #{tpu_custom_call.1} parent=1 // pred_region
      _
    $region17: #{tpu_custom_call.1} parent=1 // pred_fallthru
      _
    // Predicated region
    $region18: #{tpu_custom_call.1} parent=1 // pred_check
      _
    $region19: #{tpu_custom_call.1} parent=1 // pred_check_branch
      %28 = sbr.rel (0) target = $region21
    $region20: #{tpu_custom_call.1} parent=1 // pred_region
      _
    $region21: #{tpu_custom_call.1} parent=1 // pred_fallthru
      _
    // Predicated region
    $region22: #{tpu_custom_call.1} parent=1 // pred_check
      _
    $region23: #{tpu_custom_call.1} parent=1 // pred_check_branch
      %30 = sbr.rel (0) target = $region25
    $region24: #{tpu_custom_call.1} parent=1 // pred_region
      _
    $region25: #{tpu_custom_call.1} parent=1 // pred_fallthru
      _
    // Predicated region
    $region26: #{tpu_custom_call.1} parent=1 // pred_check
      _
    $region27: #{tpu_custom_call.1} parent=1 // pred_check_branch
      %32 = sbr.rel (0) target = $region29
    $region28: #{tpu_custom_call.1} parent=1 // pred_region
      _
    $region29: #{tpu_custom_call.1} parent=1 // pred_fallthru
      _
    // Predicated region
    $region30: #{tpu_custom_call.1} parent=1 // pred_check
      _
    $region31: #{tpu_custom_call.1} parent=1 // pred_check_branch
      %34 = sbr.rel (0) target = $region33
    $region32: #{tpu_custom_call.1} parent=1 // pred_region
      _
    $region33: #{tpu_custom_call.1} parent=1 // pred_fallthru
      _
    // Predicated region
    $region34: #{tpu_custom_call.1} parent=1 // pred_check
      _
    $region35: #{tpu_custom_call.1} parent=1 // pred_check_branch
      %36 = sbr.rel (0) target = $region37
    $region36: #{tpu_custom_call.1} parent=1 // pred_region
      _
    $region37: #{tpu_custom_call.1} parent=1 // pred_fallthru
      _
    // Predicated region
    $region38: #{tpu_custom_call.1} parent=1 // pred_check
      _
    $region39: #{tpu_custom_call.1} parent=1 // pred_check_branch
      %38 = sbr.rel (0) target = $region41
    $region40: #{tpu_custom_call.1} parent=1 // pred_region
      _
    $region41: #{tpu_custom_call.1} parent=1 // pred_fallthru
      _
    // Predicated region
    $region42: #{tpu_custom_call.1} parent=1 // pred_check
      _
    $region43: #{tpu_custom_call.1} parent=1 // pred_check_branch
      %40 = sbr.rel (0) target = $region45
    $region44: #{tpu_custom_call.1} parent=1 // pred_region
      _
    $region45: #{tpu_custom_call.1} parent=1 // pred_fallthru
      _
    // Predicated region
    $region46: #{tpu_custom_call.1} parent=1 // pred_check
      _
    $region47: #{tpu_custom_call.1} parent=1 // pred_check_branch
      %42 = sbr.rel (0) target = $region49
    $region48: #{tpu_custom_call.1} parent=1 // pred_region
      _
    $region49: #{tpu_custom_call.1} parent=1 // pred_fallthru
      _
    // Predicated region
    $region50: #{tpu_custom_call.1} parent=1 // pred_check
      _
    $region51: #{tpu_custom_call.1} parent=1 // pred_check_branch
      %44 = sbr.rel (0) target = $region53
    $region52: #{tpu_custom_call.1} parent=1 // pred_region
      _
    $region53: #{tpu_custom_call.1} parent=1 // pred_fallthru
      _
    %v45 = vld [vmem:[%s1] sm:$0xff]
    %v46 = vld [vmem:[%s1 + $0x8] sm:$0xff]
    %v47 = vld [vmem:[%s1 + $0x10] sm:$0xff]
    %v48 = vld [vmem:[%s1 + $0x18] sm:$0xff]
    %v49 = vld [vmem:[%s3] sm:$0xff]
    %v50 = vld [vmem:[%s3 + $0x8] sm:$0xff]
    %v51 = vld [vmem:[%s4] sm:$0x1]
    %v53 = vlaneseq
    %v54 = vshrl.u32 %v53, 7
    %v55 = vsub.s32 0, %v54
    %v56 = vrot.slane %v51, %v55
    %vm58 = vcmask 130048
    %v60 = vsel %vm58, %v45, 0
    %v63 = vsel %vm58, %v46, 0
    %v66 = vsel %vm58, %v47, 0
    %v69 = vsel %vm58, %v48, 0
    %71 = vmatprep.subr.mxu0 0.0
    %72 = vmatpush1.msra.mxu0 %v49
    %73 = vmatprep.subr.mxu0 0.0
    %74 = vmatpush1.msra.mxu0 %v50
    %75 = vmatprep.subr.mxu0 0.0
    %76 = vmatpush1.msra.mxu0 0.0
    %77 = vmatprep.subr.mxu0 0.0
    %78 = vmatpush1.msra.mxu0 0.0
    %79 = vmatprep.subr.mxu0 0.0
    %80 = vmatpush1.msra.mxu0 0.0
    %81 = vmatprep.subr.mxu0 0.0
    %82 = vmatpush1.msra.mxu0 0.0
    %83 = vmatprep.subr.mxu0 0.0
    %84 = vmatpush1.msra.mxu0 0.0
    %85 = vmatprep.subr.mxu0 0.0
    %86 = vmatpush1.msra.mxu0 0.0
    %87 = vmatprep.subr.mxu0 0.0
    %88 = vmatpush1.msra.mxu0 0.0
    %89 = vmatprep.subr.mxu0 0.0
    %90 = vmatpush1.msra.mxu0 0.0
    %91 = vmatprep.subr.mxu0 0.0
    %92 = vmatpush1.msra.mxu0 0.0
    %93 = vmatprep.subr.mxu0 0.0
    %94 = vmatpush1.msra.mxu0 0.0
    %95 = vmatprep.subr.mxu0 0.0
    %96 = vmatpush1.msra.mxu0 0.0
    %97 = vmatprep.subr.mxu0 0.0
    %98 = vmatpush1.msra.mxu0 0.0
    %99 = vmatprep.subr.mxu0 0.0
    %100 = vmatpush1.msra.mxu0 0.0
    %101 = vmatprep.subr.mxu0 0.0
    %102 = vmatpush1.msra.mxu0 0.0
    %103 = vmatprep.subr.mxu0 0.0
    %104 = vmatpush1.msra.mxu0 0.0
    %105 = vmatprep.subr.mxu0 0.0
    %106 = vmatpush1.msra.mxu0 0.0
    %107 = vmatprep.subr.mxu0 0.0
    %108 = vmatpush1.msra.mxu0 0.0
    %109 = vmatprep.subr.mxu0 0.0
    %110 = vmatpush1.msra.mxu0 0.0
    %111 = vmatprep.subr.mxu0 0.0
    %112 = vmatpush1.msra.mxu0 0.0
    %113 = vmatprep.subr.mxu0 0.0
    %114 = vmatpush1.msra.mxu0 0.0
    %115 = vmatprep.subr.mxu0 0.0
    %116 = vmatpush1.msra.mxu0 0.0
    %117 = vmatprep.subr.mxu0 0.0
    %118 = vmatpush1.msra.mxu0 0.0
    %119 = vmatprep.subr.mxu0 0.0
    %120 = vmatpush1.msra.mxu0 0.0
    %121 = vmatprep.subr.mxu0 0.0
    %122 = vmatpush1.msra.mxu0 0.0
    %123 = vmatprep.subr.mxu0 0.0
    %124 = vmatpush1.msra.mxu0 0.0
    %125 = vmatprep.subr.mxu0 0.0
    %126 = vmatpush1.msra.mxu0 0.0
    %127 = vmatprep.subr.mxu0 0.0
    %128 = vmatpush1.msra.mxu0 0.0
    %129 = vmatprep.subr.mxu0 0.0
    %130 = vmatpush1.msra.mxu0 0.0
    %131 = vmatprep.subr.mxu0 0.0
    %132 = vmatpush1.msra.mxu0 0.0
    %133 = vmatprep.subr.mxu0 0.0
    %134 = vmatpush1.msra.mxu0 0.0
    %135 = vmatprep.mubr.f32.mxu0 0.0
    %136 = vmatmul.mubr.f32.gmra.mrb[0].mxu0 %v60
    %v137 = vpop.f32.mrb[0].mxu0
    %v138 = vadd.f32 %v56, %v137
    %v139 = vpop.f32.mrb[0].mxu0
    %140 = vmatprep.mubr.f32.mxu0 0.0
    %141 = vmatmul.mubr.f32.gmra.mrb[0].mxu0 %v63
    %v142 = vpop.f32.mrb[0].mxu0
    %v143 = vadd.f32 %v56, %v142
    %v144 = vpop.f32.mrb[0].mxu0
    %145 = vmatprep.mubr.f32.mxu0 0.0
    %146 = vmatmul.mubr.f32.gmra.mrb[0].mxu0 %v66
    %v147 = vpop.f32.mrb[0].mxu0
    %v148 = vadd.f32 %v56, %v147
    %v149 = vpop.f32.mrb[0].mxu0
    %150 = vmatprep.mubr.f32.mxu0 0.0
    %151 = vmatmul.mubr.f32.gmra.mrb[0].mxu0 %v69
    %v152 = vpop.f32.mrb[0].mxu0
    %v153 = vadd.f32 %v56, %v152
    %v154 = vpop.f32.mrb[0].mxu0
    %155 = vdwg.mxu0
    %v156 = vmax.f32 %v138, 0.0
    %v157 = vmax.f32 %v143, 0.0
    %v158 = vmax.f32 %v148, 0.0
    %v159 = vmax.f32 %v153, 0.0
    %v160 = vld [vmem:[%s2] sm:$0xff]
    %v161 = vld [vmem:[%s2 + $0x8] sm:$0xff]
    %v162 = vld [vmem:[%s5] sm:$0xf]
    %v163 = vld [vmem:[%s6] sm:$0x1]
    %v165 = vlaneseq
    %v166 = vshrl.u32 %v165, 7
    %v167 = vsub.s32 0, %v166
    %v168 = vrot.slane %v163, %v167
    %vm170 = vcmask 31744
    %v172 = vsel %vm170, %v160, 0
    %v175 = vsel %vm170, %v161, 0
    %vm177 = vcmask 1043456
    %v179 = vsel %vm177, %v162, 0
    %181 = vmatprep.subr.mxu0 0.0
    %182 = vmatpush1.msra.mxu0 %v179
    %183 = vmatprep.subr.mxu0 0.0
    %184 = vmatpush1.msra.mxu0 0.0
    %185 = vmatprep.subr.mxu0 0.0
    %186 = vmatpush1.msra.mxu0 0.0
    %187 = vmatprep.subr.mxu0 0.0
    %188 = vmatpush1.msra.mxu0 0.0
    %189 = vmatprep.subr.mxu0 0.0
    %190 = vmatpush1.msra.mxu0 0.0
    %191 = vmatprep.subr.mxu0 0.0
    %192 = vmatpush1.msra.mxu0 0.0
    %193 = vmatprep.subr.mxu0 0.0
    %194 = vmatpush1.msra.mxu0 0.0
    %195 = vmatprep.subr.mxu0 0.0
    %196 = vmatpush1.msra.mxu0 0.0
    %197 = vmatprep.subr.mxu0 0.0
    %198 = vmatpush1.msra.mxu0 0.0
    %199 = vmatprep.subr.mxu0 0.0
    %200 = vmatpush1.msra.mxu0 0.0
    %201 = vmatprep.subr.mxu0 0.0
    %202 = vmatpush1.msra.mxu0 0.0
    %203 = vmatprep.subr.mxu0 0.0
    %204 = vmatpush1.msra.mxu0 0.0
    %205 = vmatprep.subr.mxu0 0.0
    %206 = vmatpush1.msra.mxu0 0.0
    %207 = vmatprep.subr.mxu0 0.0
    %208 = vmatpush1.msra.mxu0 0.0
    %209 = vmatprep.subr.mxu0 0.0
    %210 = vmatpush1.msra.mxu0 0.0
    %211 = vmatprep.subr.mxu0 0.0
    %212 = vmatpush1.msra.mxu0 0.0
    %213 = vmatprep.subr.mxu0 0.0
    %214 = vmatpush1.msra.mxu0 0.0
    %215 = vmatprep.subr.mxu0 0.0
    %216 = vmatpush1.msra.mxu0 0.0
    %217 = vmatprep.subr.mxu0 0.0
    %218 = vmatpush1.msra.mxu0 0.0
    %219 = vmatprep.subr.mxu0 0.0
    %220 = vmatpush1.msra.mxu0 0.0
    %221 = vmatprep.subr.mxu0 0.0
    %222 = vmatpush1.msra.mxu0 0.0
    %223 = vmatprep.subr.mxu0 0.0
    %224 = vmatpush1.msra.mxu0 0.0
    %225 = vmatprep.subr.mxu0 0.0
    %226 = vmatpush1.msra.mxu0 0.0
    %227 = vmatprep.subr.mxu0 0.0
    %228 = vmatpush1.msra.mxu0 0.0
    %229 = vmatprep.subr.mxu0 0.0
    %230 = vmatpush1.msra.mxu0 0.0
    %231 = vmatprep.subr.mxu0 0.0
    %232 = vmatpush1.msra.mxu0 0.0
    %233 = vmatprep.subr.mxu0 0.0
    %234 = vmatpush1.msra.mxu0 0.0
    %235 = vmatprep.subr.mxu0 0.0
    %236 = vmatpush1.msra.mxu0 0.0
    %237 = vmatprep.subr.mxu0 0.0
    %238 = vmatpush1.msra.mxu0 0.0
    %239 = vmatprep.subr.mxu0 0.0
    %240 = vmatpush1.msra.mxu0 0.0
    %241 = vmatprep.subr.mxu0 0.0
    %242 = vmatpush1.msra.mxu0 0.0
    %243 = vmatprep.subr.mxu0 0.0
    %244 = vmatpush1.msra.mxu0 0.0
    %245 = vmatprep.mubr.f32.mxu0 0.0
    %246 = vmatmul.mubr.f32.gmra.mrb[0].mxu0 %v172
    %v247 = vpop.f32.mrb[0].mxu0
    %v248 = vadd.f32 %v168, %v247
    %v249 = vpop.f32.mrb[0].mxu0
    %250 = vmatprep.mubr.f32.mxu0 0.0
    %251 = vmatmul.mubr.f32.gmra.mrb[0].mxu0 %v175
    %v252 = vpop.f32.mrb[0].mxu0
    %v253 = vadd.f32 %v168, %v252
    %v254 = vpop.f32.mrb[0].mxu0
    %255 = vdwg.mxu0
    %v256 = vmax.f32 %v248, 0.0
    %v257 = vmax.f32 %v253, 0.0
    %v258 = vld [vmem:[%s0] sm:$0xff]
    %v259 = vld [vmem:[%s0 + $0x8] sm:$0xff]
    %v260 = vld [vmem:[%s7] sm:$0xff]
    %v261 = vld [vmem:[%s7 + $0x8] sm:$0xff]
    %v262 = vld [vmem:[%s7 + $0x10] sm:$0xff]
    %v263 = vld [vmem:[%s7 + $0x18] sm:$0xff]
    %v264 = vld [vmem:[%s7 + $0x20] sm:$0xff]
    %v265 = vld [vmem:[%s7 + $0x28] sm:$0xff]
    %v266 = vld [vmem:[%s7 + $0x30] sm:$0xff]
    %v267 = vld [vmem:[%s7 + $0x38] sm:$0xff]
    %vm268 = vcmask 261120
    %v270 = vsel %vm268, %v156, 0
    %v273 = vsel %vm268, %v157, 0
    %275 = vmatprep.subr.mxu0 0.0
    %276 = vmatpush1.msra.mxu0 %v264
    %277 = vmatprep.subr.mxu0 0.0
    %278 = vmatpush1.msra.mxu0 %v265
    %279 = vmatprep.subr.mxu0 0.0
    %280 = vmatpush1.msra.mxu0 %v266
    %281 = vmatprep.subr.mxu0 0.0
    %282 = vmatpush1.msra.mxu0 %v267
    %283 = vmatprep.subr.mxu0 0.0
    %284 = vmatpush1.msra.mxu0 0.0
    %285 = vmatprep.subr.mxu0 0.0
    %286 = vmatpush1.msra.mxu0 0.0
    %287 = vmatprep.subr.mxu0 0.0
    %288 = vmatpush1.msra.mxu0 0.0
    %289 = vmatprep.subr.mxu0 0.0
    %290 = vmatpush1.msra.mxu0 0.0
    %291 = vmatprep.subr.mxu0 0.0
    %292 = vmatpush1.msra.mxu0 0.0
    %293 = vmatprep.subr.mxu0 0.0
    %294 = vmatpush1.msra.mxu0 0.0
    %295 = vmatprep.subr.mxu0 0.0
    %296 = vmatpush1.msra.mxu0 0.0
    %297 = vmatprep.subr.mxu0 0.0
    %298 = vmatpush1.msra.mxu0 0.0
    %299 = vmatprep.subr.mxu0 0.0
    %300 = vmatpush1.msra.mxu0 0.0
    %301 = vmatprep.subr.mxu0 0.0
    %302 = vmatpush1.msra.mxu0 0.0
    %303 = vmatprep.subr.mxu0 0.0
    %304 = vmatpush1.msra.mxu0 0.0
    %305 = vmatprep.subr.mxu0 0.0
    %306 = vmatpush1.msra.mxu0 0.0
    %307 = vmatprep.subr.mxu0 0.0
    %308 = vmatpush1.msra.mxu0 0.0
    %309 = vmatprep.subr.mxu0 0.0
    %310 = vmatpush1.msra.mxu0 0.0
    %311 = vmatprep.subr.mxu0 0.0
    %312 = vmatpush1.msra.mxu0 0.0
    %313 = vmatprep.subr.mxu0 0.0
    %314 = vmatpush1.msra.mxu0 0.0
    %315 = vmatprep.subr.mxu0 0.0
    %316 = vmatpush1.msra.mxu0 0.0
    %317 = vmatprep.subr.mxu0 0.0
    %318 = vmatpush1.msra.mxu0 0.0
    %319 = vmatprep.subr.mxu0 0.0
    %320 = vmatpush1.msra.mxu0 0.0
    %321 = vmatprep.subr.mxu0 0.0
    %322 = vmatpush1.msra.mxu0 0.0
    %323 = vmatprep.subr.mxu0 0.0
    %324 = vmatpush1.msra.mxu0 0.0
    %325 = vmatprep.subr.mxu0 0.0
    %326 = vmatpush1.msra.mxu0 0.0
    %327 = vmatprep.subr.mxu0 0.0
    %328 = vmatpush1.msra.mxu0 0.0
    %329 = vmatprep.subr.mxu0 0.0
    %330 = vmatpush1.msra.mxu0 0.0
    %331 = vmatprep.subr.mxu0 0.0
    %332 = vmatpush1.msra.mxu0 0.0
    %333 = vmatprep.subr.mxu0 0.0
    %334 = vmatpush1.msra.mxu0 0.0
    %335 = vmatprep.subr.mxu0 0.0
    %336 = vmatpush1.msra.mxu0 0.0
    %337 = vmatprep.subr.mxu0 0.0
    %338 = vmatpush1.msra.mxu0 0.0
    %339 = vmatprep.mubr.f32.mxu0 0.0
    %340 = vmatmul.mubr.f32.gmra.mrb[0].mxu0 %v270
    %v341 = vpop.f32.mrb[0].mxu0
    %v342 = vadd.f32 0.0, %v341
    %v343 = vpop.f32.mrb[0].mxu0
    %344 = vmatprep.mubr.f32.mxu0 0.0
    %345 = vmatmul.mubr.f32.gmra.mrb[0].mxu0 %v273
    %v346 = vpop.f32.mrb[0].mxu0
    %v347 = vadd.f32 0.0, %v346
    %v348 = vpop.f32.mrb[0].mxu0
    %349 = vdwg.mxu0
    %v351 = vsel %vm268, %v258, 0
    %v354 = vsel %vm268, %v259, 0
    %356 = vmatprep.subr.mxu0 0.0
    %357 = vmatpush1.msra.mxu0 %v260
    %358 = vmatprep.subr.mxu0 0.0
    %359 = vmatpush1.msra.mxu0 %v261
    %360 = vmatprep.subr.mxu0 0.0
    %361 = vmatpush1.msra.mxu0 %v262
    %362 = vmatprep.subr.mxu0 0.0
    %363 = vmatpush1.msra.mxu0 %v263
    %364 = vmatprep.subr.mxu0 0.0
    %365 = vmatpush1.msra.mxu0 0.0
    %366 = vmatprep.subr.mxu0 0.0
    %367 = vmatpush1.msra.mxu0 0.0
    %368 = vmatprep.subr.mxu0 0.0
    %369 = vmatpush1.msra.mxu0 0.0
    %370 = vmatprep.subr.mxu0 0.0
    %371 = vmatpush1.msra.mxu0 0.0
    %372 = vmatprep.subr.mxu0 0.0
    %373 = vmatpush1.msra.mxu0 0.0
    %374 = vmatprep.subr.mxu0 0.0
    %375 = vmatpush1.msra.mxu0 0.0
    %376 = vmatprep.subr.mxu0 0.0
    %377 = vmatpush1.msra.mxu0 0.0
    %378 = vmatprep.subr.mxu0 0.0
    %379 = vmatpush1.msra.mxu0 0.0
    %380 = vmatprep.subr.mxu0 0.0
    %381 = vmatpush1.msra.mxu0 0.0
    %382 = vmatprep.subr.mxu0 0.0
    %383 = vmatpush1.msra.mxu0 0.0
    %384 = vmatprep.subr.mxu0 0.0
    %385 = vmatpush1.msra.mxu0 0.0
    %386 = vmatprep.subr.mxu0 0.0
    %387 = vmatpush1.msra.mxu0 0.0
    %388 = vmatprep.subr.mxu0 0.0
    %389 = vmatpush1.msra.mxu0 0.0
    %390 = vmatprep.subr.mxu0 0.0
    %391 = vmatpush1.msra.mxu0 0.0
    %392 = vmatprep.subr.mxu0 0.0
    %393 = vmatpush1.msra.mxu0 0.0
    %394 = vmatprep.subr.mxu0 0.0
    %395 = vmatpush1.msra.mxu0 0.0
    %396 = vmatprep.subr.mxu0 0.0
    %397 = vmatpush1.msra.mxu0 0.0
    %398 = vmatprep.subr.mxu0 0.0
    %399 = vmatpush1.msra.mxu0 0.0
    %400 = vmatprep.subr.mxu0 0.0
    %401 = vmatpush1.msra.mxu0 0.0
    %402 = vmatprep.subr.mxu0 0.0
    %403 = vmatpush1.msra.mxu0 0.0
    %404 = vmatprep.subr.mxu0 0.0
    %405 = vmatpush1.msra.mxu0 0.0
    %406 = vmatprep.subr.mxu0 0.0
    %407 = vmatpush1.msra.mxu0 0.0
    %408 = vmatprep.subr.mxu0 0.0
    %409 = vmatpush1.msra.mxu0 0.0
    %410 = vmatprep.subr.mxu0 0.0
    %411 = vmatpush1.msra.mxu0 0.0
    %412 = vmatprep.subr.mxu0 0.0
    %413 = vmatpush1.msra.mxu0 0.0
    %414 = vmatprep.subr.mxu0 0.0
    %415 = vmatpush1.msra.mxu0 0.0
    %416 = vmatprep.subr.mxu0 0.0
    %417 = vmatpush1.msra.mxu0 0.0
    %418 = vmatprep.subr.mxu0 0.0
    %419 = vmatpush1.msra.mxu0 0.0
    %420 = vmatprep.mubr.f32.mxu0 0.0
    %421 = vmatmul.mubr.f32.gmra.mrb[0].mxu0 %v351
    %v422 = vpop.f32.mrb[0].mxu0
    %v423 = vadd.f32 %v342, %v422
    %v424 = vpop.f32.mrb[0].mxu0
    %425 = vmatprep.mubr.f32.mxu0 0.0
    %426 = vmatmul.mubr.f32.gmra.mrb[0].mxu0 %v354
    %v427 = vpop.f32.mrb[0].mxu0
    %v428 = vadd.f32 %v347, %v427
    %v429 = vpop.f32.mrb[0].mxu0
    %430 = vdwg.mxu0
    %v431 = vld [vmem:[%s7 + $0x40] sm:$0xff]
    %v432 = vld [vmem:[%s7 + $0x48] sm:$0xff]
    %v434 = vsel %vm58, %v256, 0
    %v437 = vsel %vm58, %v257, 0
    %439 = vmatprep.subr.mxu0 0.0
    %440 = vmatpush1.msra.mxu0 %v431
    %441 = vmatprep.subr.mxu0 0.0
    %442 = vmatpush1.msra.mxu0 %v432
    %443 = vmatprep.subr.mxu0 0.0
    %444 = vmatpush1.msra.mxu0 0.0
    %445 = vmatprep.subr.mxu0 0.0
    %446 = vmatpush1.msra.mxu0 0.0
    %447 = vmatprep.subr.mxu0 0.0
    %448 = vmatpush1.msra.mxu0 0.0
    %449 = vmatprep.subr.mxu0 0.0
    %450 = vmatpush1.msra.mxu0 0.0
    %451 = vmatprep.subr.mxu0 0.0
    %452 = vmatpush1.msra.mxu0 0.0
    %453 = vmatprep.subr.mxu0 0.0
    %454 = vmatpush1.msra.mxu0 0.0
    %455 = vmatprep.subr.mxu0 0.0
    %456 = vmatpush1.msra.mxu0 0.0
    %457 = vmatprep.subr.mxu0 0.0
    %458 = vmatpush1.msra.mxu0 0.0
    %459 = vmatprep.subr.mxu0 0.0
    %460 = vmatpush1.msra.mxu0 0.0
    %461 = vmatprep.subr.mxu0 0.0
    %462 = vmatpush1.msra.mxu0 0.0
    %463 = vmatprep.subr.mxu0 0.0
    %464 = vmatpush1.msra.mxu0 0.0
    %465 = vmatprep.subr.mxu0 0.0
    %466 = vmatpush1.msra.mxu0 0.0
    %467 = vmatprep.subr.mxu0 0.0
    %468 = vmatpush1.msra.mxu0 0.0
    %469 = vmatprep.subr.mxu0 0.0
    %470 = vmatpush1.msra.mxu0 0.0
    %471 = vmatprep.subr.mxu0 0.0
    %472 = vmatpush1.msra.mxu0 0.0
    %473 = vmatprep.subr.mxu0 0.0
    %474 = vmatpush1.msra.mxu0 0.0
    %475 = vmatprep.subr.mxu0 0.0
    %476 = vmatpush1.msra.mxu0 0.0
    %477 = vmatprep.subr.mxu0 0.0
    %478 = vmatpush1.msra.mxu0 0.0
    %479 = vmatprep.subr.mxu0 0.0
    %480 = vmatpush1.msra.mxu0 0.0
    %481 = vmatprep.subr.mxu0 0.0
    %482 = vmatpush1.msra.mxu0 0.0
    %483 = vmatprep.subr.mxu0 0.0
    %484 = vmatpush1.msra.mxu0 0.0
    %485 = vmatprep.subr.mxu0 0.0
    %486 = vmatpush1.msra.mxu0 0.0
    %487 = vmatprep.subr.mxu0 0.0
    %488 = vmatpush1.msra.mxu0 0.0
    %489 = vmatprep.subr.mxu0 0.0
    %490 = vmatpush1.msra.mxu0 0.0
    %491 = vmatprep.subr.mxu0 0.0
    %492 = vmatpush1.msra.mxu0 0.0
    %493 = vmatprep.subr.mxu0 0.0
    %494 = vmatpush1.msra.mxu0 0.0
    %495 = vmatprep.subr.mxu0 0.0
    %496 = vmatpush1.msra.mxu0 0.0
    %497 = vmatprep.subr.mxu0 0.0
    %498 = vmatpush1.msra.mxu0 0.0
    %499 = vmatprep.subr.mxu0 0.0
    %500 = vmatpush1.msra.mxu0 0.0
    %501 = vmatprep.subr.mxu0 0.0
    %502 = vmatpush1.msra.mxu0 0.0
    %503 = vmatprep.mubr.f32.mxu0 0.0
    %504 = vmatmul.mubr.f32.gmra.mrb[0].mxu0 %v434
    %v505 = vpop.f32.mrb[0].mxu0
    %v506 = vadd.f32 0.0, %v505
    %v507 = vpop.f32.mrb[0].mxu0
    %508 = vmatprep.mubr.f32.mxu0 0.0
    %509 = vmatmul.mubr.f32.gmra.mrb[0].mxu0 %v437
    %v510 = vpop.f32.mrb[0].mxu0
    %v511 = vadd.f32 0.0, %v510
    %v512 = vpop.f32.mrb[0].mxu0
    %513 = vdwg.mxu0
    %v514 = vadd.f32 %v423, %v506
    %v515 = vadd.f32 %v428, %v511
    %v516 = vld [vmem:[%s7 + $0x50] sm:$0xff]
    %v517 = vld [vmem:[%s7 + $0x58] sm:$0xff]
    %v518 = vld [vmem:[%s7 + $0x60] sm:$0xff]
    %v519 = vld [vmem:[%s7 + $0x68] sm:$0xff]
    %v521 = vsel %vm268, %v158, 0
    %v524 = vsel %vm268, %v159, 0
    %526 = vmatprep.subr.mxu0 0.0
    %527 = vmatpush1.msra.mxu0 %v516
    %528 = vmatprep.subr.mxu0 0.0
    %529 = vmatpush1.msra.mxu0 %v517
    %530 = vmatprep.subr.mxu0 0.0
    %531 = vmatpush1.msra.mxu0 %v518
    %532 = vmatprep.subr.mxu0 0.0
    %533 = vmatpush1.msra.mxu0 %v519
    %534 = vmatprep.subr.mxu0 0.0
    %535 = vmatpush1.msra.mxu0 0.0
    %536 = vmatprep.subr.mxu0 0.0
    %537 = vmatpush1.msra.mxu0 0.0
    %538 = vmatprep.subr.mxu0 0.0
    %539 = vmatpush1.msra.mxu0 0.0
    %540 = vmatprep.subr.mxu0 0.0
    %541 = vmatpush1.msra.mxu0 0.0
    %542 = vmatprep.subr.mxu0 0.0
    %543 = vmatpush1.msra.mxu0 0.0
    %544 = vmatprep.subr.mxu0 0.0
    %545 = vmatpush1.msra.mxu0 0.0
    %546 = vmatprep.subr.mxu0 0.0
    %547 = vmatpush1.msra.mxu0 0.0
    %548 = vmatprep.subr.mxu0 0.0
    %549 = vmatpush1.msra.mxu0 0.0
    %550 = vmatprep.subr.mxu0 0.0
    %551 = vmatpush1.msra.mxu0 0.0
    %552 = vmatprep.subr.mxu0 0.0
    %553 = vmatpush1.msra.mxu0 0.0
    %554 = vmatprep.subr.mxu0 0.0
    %555 = vmatpush1.msra.mxu0 0.0
    %556 = vmatprep.subr.mxu0 0.0
    %557 = vmatpush1.msra.mxu0 0.0
    %558 = vmatprep.subr.mxu0 0.0
    %559 = vmatpush1.msra.mxu0 0.0
    %560 = vmatprep.subr.mxu0 0.0
    %561 = vmatpush1.msra.mxu0 0.0
    %562 = vmatprep.subr.mxu0 0.0
    %563 = vmatpush1.msra.mxu0 0.0
    %564 = vmatprep.subr.mxu0 0.0
    %565 = vmatpush1.msra.mxu0 0.0
    %566 = vmatprep.subr.mxu0 0.0
    %567 = vmatpush1.msra.mxu0 0.0
    %568 = vmatprep.subr.mxu0 0.0
    %569 = vmatpush1.msra.mxu0 0.0
    %570 = vmatprep.subr.mxu0 0.0
    %571 = vmatpush1.msra.mxu0 0.0
    %572 = vmatprep.subr.mxu0 0.0
    %573 = vmatpush1.msra.mxu0 0.0
    %574 = vmatprep.subr.mxu0 0.0
    %575 = vmatpush1.msra.mxu0 0.0
    %576 = vmatprep.subr.mxu0 0.0
    %577 = vmatpush1.msra.mxu0 0.0
    %578 = vmatprep.subr.mxu0 0.0
    %579 = vmatpush1.msra.mxu0 0.0
    %580 = vmatprep.subr.mxu0 0.0
    %581 = vmatpush1.msra.mxu0 0.0
    %582 = vmatprep.subr.mxu0 0.0
    %583 = vmatpush1.msra.mxu0 0.0
    %584 = vmatprep.subr.mxu0 0.0
    %585 = vmatpush1.msra.mxu0 0.0
    %586 = vmatprep.subr.mxu0 0.0
    %587 = vmatpush1.msra.mxu0 0.0
    %588 = vmatprep.subr.mxu0 0.0
    %589 = vmatpush1.msra.mxu0 0.0
    %590 = vmatprep.mubr.f32.mxu0 0.0
    %591 = vmatmul.mubr.f32.gmra.mrb[0].mxu0 %v521
    %v592 = vpop.f32.mrb[0].mxu0
    %v593 = vadd.f32 0.0, %v592
    %v594 = vpop.f32.mrb[0].mxu0
    %595 = vmatprep.mubr.f32.mxu0 0.0
    %596 = vmatmul.mubr.f32.gmra.mrb[0].mxu0 %v524
    %v597 = vpop.f32.mrb[0].mxu0
    %v598 = vadd.f32 0.0, %v597
    %v599 = vpop.f32.mrb[0].mxu0
    %600 = vdwg.mxu0
    %v601 = vadd.f32 %v514, %v593
    %v602 = vadd.f32 %v515, %v598
    %v603 = vld [vmem:[%s8] sm:$0x1]
    %v605 = vlaneseq
    %v606 = vshrl.u32 %v605, 7
    %v607 = vsub.s32 0, %v606
    %v608 = vrot.slane %v603, %v607
    %v610 = vadd.f32 %v601, %v608
    %v611 = vadd.f32 %v602, %v608
    %v612 = vmax.f32 %v610, 0.0
    %v613 = vmax.f32 %v611, 0.0
    %v614 = vld [vmem:[%s9] sm:$0xff]
    %v615 = vld [vmem:[%s9 + $0x8] sm:$0xff]
    %v616 = vld [vmem:[%s9 + $0x10] sm:$0xff]
    %v617 = vld [vmem:[%s9 + $0x18] sm:$0xff]
    %v618 = vld [vmem:[%s9 + $0x20] sm:$0xff]
    %v619 = vld [vmem:[%s9 + $0x28] sm:$0xff]
    %v620 = vld [vmem:[%s9 + $0x30] sm:$0xff]
    %v621 = vld [vmem:[%s9 + $0x38] sm:$0xff]
    %v622 = vld [vmem:[%s10] sm:$0x1]
    %v624 = vlaneseq
    %v625 = vshrl.u32 %v624, 7
    %v626 = vsub.s32 0, %v625
    %v627 = vrot.slane %v622, %v626
    %vm629 = vcmask 523264
    %v631 = vsel %vm629, %v612, 0
    %v634 = vsel %vm629, %v613, 0
    %636 = vmatprep.subr.mxu0 0.0
    %637 = vmatpush1.msra.mxu0 %v614
    %638 = vmatprep.subr.mxu0 0.0
    %639 = vmatpush1.msra.mxu0 %v615
    %640 = vmatprep.subr.mxu0 0.0
    %641 = vmatpush1.msra.mxu0 %v616
    %642 = vmatprep.subr.mxu0 0.0
    %643 = vmatpush1.msra.mxu0 %v617
    %644 = vmatprep.subr.mxu0 0.0
    %645 = vmatpush1.msra.mxu0 %v618
    %646 = vmatprep.subr.mxu0 0.0
    %647 = vmatpush1.msra.mxu0 %v619
    %648 = vmatprep.subr.mxu0 0.0
    %649 = vmatpush1.msra.mxu0 %v620
    %650 = vmatprep.subr.mxu0 0.0
    %651 = vmatpush1.msra.mxu0 %v621
    %652 = vmatprep.subr.mxu0 0.0
    %653 = vmatpush1.msra.mxu0 0.0
    %654 = vmatprep.subr.mxu0 0.0
    %655 = vmatpush1.msra.mxu0 0.0
    %656 = vmatprep.subr.mxu0 0.0
    %657 = vmatpush1.msra.mxu0 0.0
    %658 = vmatprep.subr.mxu0 0.0
    %659 = vmatpush1.msra.mxu0 0.0
    %660 = vmatprep.subr.mxu0 0.0
    %661 = vmatpush1.msra.mxu0 0.0
    %662 = vmatprep.subr.mxu0 0.0
    %663 = vmatpush1.msra.mxu0 0.0
    %664 = vmatprep.subr.mxu0 0.0
    %665 = vmatpush1.msra.mxu0 0.0
    %666 = vmatprep.subr.mxu0 0.0
    %667 = vmatpush1.msra.mxu0 0.0
    %668 = vmatprep.subr.mxu0 0.0
    %669 = vmatpush1.msra.mxu0 0.0
    %670 = vmatprep.subr.mxu0 0.0
    %671 = vmatpush1.msra.mxu0 0.0
    %672 = vmatprep.subr.mxu0 0.0
    %673 = vmatpush1.msra.mxu0 0.0
    %674 = vmatprep.subr.mxu0 0.0
    %675 = vmatpush1.msra.mxu0 0.0
    %676 = vmatprep.subr.mxu0 0.0
    %677 = vmatpush1.msra.mxu0 0.0
    %678 = vmatprep.subr.mxu0 0.0
    %679 = vmatpush1.msra.mxu0 0.0
    %680 = vmatprep.subr.mxu0 0.0
    %681 = vmatpush1.msra.mxu0 0.0
    %682 = vmatprep.subr.mxu0 0.0
    %683 = vmatpush1.msra.mxu0 0.0
    %684 = vmatprep.subr.mxu0 0.0
    %685 = vmatpush1.msra.mxu0 0.0
    %686 = vmatprep.subr.mxu0 0.0
    %687 = vmatpush1.msra.mxu0 0.0
    %688 = vmatprep.subr.mxu0 0.0
    %689 = vmatpush1.msra.mxu0 0.0
    %690 = vmatprep.subr.mxu0 0.0
    %691 = vmatpush1.msra.mxu0 0.0
    %692 = vmatprep.subr.mxu0 0.0
    %693 = vmatpush1.msra.mxu0 0.0
    %694 = vmatprep.subr.mxu0 0.0
    %695 = vmatpush1.msra.mxu0 0.0
    %696 = vmatprep.subr.mxu0 0.0
    %697 = vmatpush1.msra.mxu0 0.0
    %698 = vmatprep.subr.mxu0 0.0
    %699 = vmatpush1.msra.mxu0 0.0
    %700 = vmatprep.mubr.f32.mxu0 0.0
    %701 = vmatmul.mubr.f32.gmra.mrb[0].mxu0 %v631
    %v702 = vpop.f32.mrb[0].mxu0
    %v703 = vadd.f32 %v627, %v702
    %v704 = vpop.f32.mrb[0].mxu0
    %705 = vmatprep.mubr.f32.mxu0 0.0
    %706 = vmatmul.mubr.f32.gmra.mrb[0].mxu0 %v634
    %v707 = vpop.f32.mrb[0].mxu0
    %v708 = vadd.f32 %v627, %v707
    %v709 = vpop.f32.mrb[0].mxu0
    %710 = vdwg.mxu0
    %v711 = vmax.f32 %v703, 0.0
    %v712 = vmax.f32 %v708, 0.0
    %v713 = vld [vmem:[%s11] sm:$0xff]
    %v714 = vld [vmem:[%s11 + $0x8] sm:$0xff]
    %v715 = vld [vmem:[%s11 + $0x10] sm:$0xff]
    %v716 = vld [vmem:[%s11 + $0x18] sm:$0xff]
    %v717 = vld [vmem:[%s11 + $0x20] sm:$0xff]
    %v718 = vld [vmem:[%s11 + $0x28] sm:$0xff]
    %v719 = vld [vmem:[%s11 + $0x30] sm:$0xff]
    %v720 = vld [vmem:[%s11 + $0x38] sm:$0xff]
    %v721 = vld [vmem:[%s12] sm:$0x1]
    %v723 = vlaneseq
    %v724 = vshrl.u32 %v723, 7
    %v725 = vsub.s32 0, %v724
    %v726 = vrot.slane %v721, %v725
    %v729 = vsel %vm629, %v711, 0
    %v732 = vsel %vm629, %v712, 0
    %734 = vmatprep.subr.mxu0 0.0
    %735 = vmatpush1.msra.mxu0 %v713
    %736 = vmatprep.subr.mxu0 0.0
    %737 = vmatpush1.msra.mxu0 %v714
    %738 = vmatprep.subr.mxu0 0.0
    %739 = vmatpush1.msra.mxu0 %v715
    %740 = vmatprep.subr.mxu0 0.0
    %741 = vmatpush1.msra.mxu0 %v716
    %742 = vmatprep.subr.mxu0 0.0
    %743 = vmatpush1.msra.mxu0 %v717
    %744 = vmatprep.subr.mxu0 0.0
    %745 = vmatpush1.msra.mxu0 %v718
    %746 = vmatprep.subr.mxu0 0.0
    %747 = vmatpush1.msra.mxu0 %v719
    %748 = vmatprep.subr.mxu0 0.0
    %749 = vmatpush1.msra.mxu0 %v720
    %750 = vmatprep.subr.mxu0 0.0
    %751 = vmatpush1.msra.mxu0 0.0
    %752 = vmatprep.subr.mxu0 0.0
    %753 = vmatpush1.msra.mxu0 0.0
    %754 = vmatprep.subr.mxu0 0.0
    %755 = vmatpush1.msra.mxu0 0.0
    %756 = vmatprep.subr.mxu0 0.0
    %757 = vmatpush1.msra.mxu0 0.0
    %758 = vmatprep.subr.mxu0 0.0
    %759 = vmatpush1.msra.mxu0 0.0
    %760 = vmatprep.subr.mxu0 0.0
    %761 = vmatpush1.msra.mxu0 0.0
    %762 = vmatprep.subr.mxu0 0.0
    %763 = vmatpush1.msra.mxu0 0.0
    %764 = vmatprep.subr.mxu0 0.0
    %765 = vmatpush1.msra.mxu0 0.0
    %766 = vmatprep.subr.mxu0 0.0
    %767 = vmatpush1.msra.mxu0 0.0
    %768 = vmatprep.subr.mxu0 0.0
    %769 = vmatpush1.msra.mxu0 0.0
    %770 = vmatprep.subr.mxu0 0.0
    %771 = vmatpush1.msra.mxu0 0.0
    %772 = vmatprep.subr.mxu0 0.0
    %773 = vmatpush1.msra.mxu0 0.0
    %774 = vmatprep.subr.mxu0 0.0
    %775 = vmatpush1.msra.mxu0 0.0
    %776 = vmatprep.subr.mxu0 0.0
    %777 = vmatpush1.msra.mxu0 0.0
    %778 = vmatprep.subr.mxu0 0.0
    %779 = vmatpush1.msra.mxu0 0.0
    %780 = vmatprep.subr.mxu0 0.0
    %781 = vmatpush1.msra.mxu0 0.0
    %782 = vmatprep.subr.mxu0 0.0
    %783 = vmatpush1.msra.mxu0 0.0
    %784 = vmatprep.subr.mxu0 0.0
    %785 = vmatpush1.msra.mxu0 0.0
    %786 = vmatprep.subr.mxu0 0.0
    %787 = vmatpush1.msra.mxu0 0.0
    %788 = vmatprep.subr.mxu0 0.0
    %789 = vmatpush1.msra.mxu0 0.0
    %790 = vmatprep.subr.mxu0 0.0
    %791 = vmatpush1.msra.mxu0 0.0
    %792 = vmatprep.subr.mxu0 0.0
    %793 = vmatpush1.msra.mxu0 0.0
    %794 = vmatprep.subr.mxu0 0.0
    %795 = vmatpush1.msra.mxu0 0.0
    %796 = vmatprep.subr.mxu0 0.0
    %797 = vmatpush1.msra.mxu0 0.0
    %798 = vmatprep.mubr.f32.mxu0 0.0
    %799 = vmatmul.mubr.f32.gmra.mrb[0].mxu0 %v729
    %v800 = vpop.f32.mrb[0].mxu0
    %v801 = vadd.f32 %v726, %v800
    %v802 = vpop.f32.mrb[0].mxu0
    %803 = vmatprep.mubr.f32.mxu0 0.0
    %804 = vmatmul.mubr.f32.gmra.mrb[0].mxu0 %v732
    %v805 = vpop.f32.mrb[0].mxu0
    %v806 = vadd.f32 %v726, %v805
    %v807 = vpop.f32.mrb[0].mxu0
    %808 = vdwg.mxu0
    %809 = vst [vmem:[#allocation2] sm:$0xff] %v801
    %810 = vst [vmem:[#allocation2 + $0x8] sm:$0xff] %v806
    // Predicated region
    $region54: #{tpu_custom_call.1} parent=1 // pred_check
      _
    $region55: #{tpu_custom_call.1} parent=1 // pred_check_branch
      %812 = sbr.rel (0) target = $region57
    $region56: #{tpu_custom_call.1} parent=1 // pred_region
      %s814 = ssub.s32 256, 256
      %815 = vsyncadd [#allocation3], %s814
      %s816 = sshll.u32 [#allocation2], 4
      %s817 = int_to_ptr.vmem [resolvable:$true] %s816
      %822 = dma.vmem_to_hbm [thread:$0]  %s817, 256, %s13, [#allocation3], 128, 128, 8
    $region57: #{tpu_custom_call.1} parent=1 // pred_fallthru
      _
    // Predicated region
    $region58: #{tpu_custom_call.1} parent=1 // pred_check
      _
    $region59: #{tpu_custom_call.1} parent=1 // pred_check_branch
      %824 = sbr.rel (0) target = $region61
    $region60: #{tpu_custom_call.1} parent=1 // pred_region
      %825 = dma.done [#allocation3], 256
    $region61: #{tpu_custom_call.1} parent=1 // pred_fallthru
      _
    %826 = vsyncpa [#allocation3], 1

</llo_original>
